<compile_context>
chip_gen: v5e
topology: v5e:2x2
jax: 0.10.0
libtpu: 0.0.40
codegen_flags: <defaults>
</compile_context>

<pallas_src>
import jax
import jax.numpy as jnp
from jax.experimental import pallas as pl
from jax.experimental.pallas import tpu as pltpu


def _make_outconv_kernel(c_in, c_out):
    def kernel(w_ref, b_ref, x_ref, o_ref):
        # w_ref: (C_out, C_in) in SMEM, b_ref: (C_out,) in SMEM
        # x_ref: (C_in, TS) in VMEM (lane-dense), o_ref: (C_out, TS) in VMEM
        x = x_ref[...].astype(jnp.float32)  # cast once per tile (v5e: no bf16 VPU)
        rows = []
        for o in range(c_out):
            acc = x[0:1, :] * w_ref[o, 0]
            for c in range(1, c_in):
                acc = acc + x[c:c + 1, :] * w_ref[o, c]
            rows.append(acc + b_ref[o])
        o_ref[...] = jnp.concatenate(rows, axis=0).astype(o_ref.dtype)

    return kernel


def outconv_r_forward(x, weight, bias, *, max_tile=8192):
    """x: (N, C_in, D, H, W); weight: (C_out, C_in, 1, 1, 1); bias: (C_out,)."""
    N, C_in, D, H, W = x.shape
    C_out = weight.shape[0]
    S = D * H * W

    # Zero-copy reshapes: keep channel-major (NCDHW) layout end to end.
    x3d = x.reshape(N, C_in, S)
    w2d = weight.reshape(C_out, C_in)
    b1d = bias.reshape(C_out)

    # Spatial tile: multiple of 128 lanes, as large as reasonable (no HBM pad;
    # ragged last tile is handled by Pallas boundary masking).
    TS = min(max_tile, pl.cdiv(S, 128) * 128)
    n_s_tiles = pl.cdiv(S, TS)

    itemsize = jnp.dtype(x.dtype).itemsize
    cost = pl.CostEstimate(
        flops=2 * N * S * C_in * C_out,
        transcendentals=0,
        bytes_accessed=(N * C_in * S + N * C_out * S) * itemsize
        + (C_out * C_in + C_out) * 4,
    )

    out3d = pl.pallas_call(
        _make_outconv_kernel(C_in, C_out),
        out_shape=jax.ShapeDtypeStruct((N, C_out, S), x.dtype),
        grid_spec=pltpu.PrefetchScalarGridSpec(
            num_scalar_prefetch=0,
            grid=(N, n_s_tiles),
            in_specs=[
                pl.BlockSpec(memory_space=pltpu.MemorySpace.SMEM),  # weight (C_out, C_in)
                pl.BlockSpec(memory_space=pltpu.MemorySpace.SMEM),  # bias (C_out,)
                pl.BlockSpec((None, C_in, TS), lambda n, s: (n, 0, s)),
            ],
            out_specs=pl.BlockSpec((None, C_out, TS), lambda n, s: (n, 0, s)),
        ),
        compiler_params=pltpu.CompilerParams(
            dimension_semantics=("parallel", "parallel")),
        cost_estimate=cost,
    )(w2d, b1d, x3d)

    return out3d.reshape(N, C_out, D, H, W)


if __name__ == "__main__":
    # Small shapes consistent with Conv3d(in_ch=4, out_ch=3, kernel_size=1).
    N, C_in, C_out, D, H, W = 2, 4, 3, 8, 8, 8

    key = jax.random.PRNGKey(0)
    kx, kw, kb = jax.random.split(key, 3)

    x = jax.random.normal(kx, (N, C_in, D, H, W), dtype=jnp.float32)
    weight = jax.random.normal(kw, (C_out, C_in, 1, 1, 1), dtype=jnp.float32) * 0.1
    bias = jax.random.normal(kb, (C_out,), dtype=jnp.float32) * 0.1

    y = outconv_r_forward(x, weight, bias)
    y = jax.block_until_ready(y)

    # Pure-JAX reference for correctness.
    y_ref = (jnp.einsum("ncdhw,oc->nodhw", x, weight.reshape(C_out, C_in))
             + bias[None, :, None, None, None])
    assert y.shape == (N, C_out, D, H, W)
    assert jnp.allclose(y, y_ref, atol=1e-5, rtol=1e-5)

    print("KERNEL_OK")
</pallas_src>

<mosaic_0001>
module attributes {stable_mosaic.version = 11 : i64} {
  func.func @kernel(%arg0: i32, %arg1: i32, %arg2: memref<3x4xf32, #tpu.memory_space<smem>>, %arg3: memref<3xf32, #tpu.memory_space<smem>>, %arg4: memref<1x4x512xf32, #tpu.memory_space<vmem>>, %arg5: memref<1x3x512xf32, #tpu.memory_space<vmem>>) attributes {dimension_semantics = [#tpu.dimension_semantics<parallel>, #tpu.dimension_semantics<parallel>], iteration_bounds = array<i64: 2, 1>, scalar_prefetch = 0 : i64, scratch_operands = 0 : i64, tpu.core_type = #tpu.core_type<tc>, window_params = [{transform_indices = @transform_0, window_bounds = array<i64: 3, 4>}, {transform_indices = @transform_1, window_bounds = array<i64: 3>}, {transform_indices = @transform_2, window_bounds = array<i64: 1, 4, 512>}, {transform_indices = @transform_3, window_bounds = array<i64: 1, 3, 512>}]} {
    %c0 = arith.constant 0 : index
    %c0_0 = arith.constant 0 : index
    %c0_1 = arith.constant 0 : index
    %0 = vector.load %arg4[%c0, %c0_0, %c0_1] : memref<1x4x512xf32, #tpu.memory_space<vmem>>, vector<1x4x512xf32>
    %1 = vector.shape_cast %0 : vector<1x4x512xf32> to vector<4x512xf32>
    %2 = vector.extract_strided_slice %1 {offsets = [0, 0], sizes = [1, 512], strides = [1, 1]} : vector<4x512xf32> to vector<1x512xf32>
    %c0_2 = arith.constant 0 : index
    %c0_3 = arith.constant 0 : index
    %3 = memref.load %arg2[%c0_2, %c0_3] : memref<3x4xf32, #tpu.memory_space<smem>>
    %4 = vector.broadcast %3 : f32 to vector<1x512xf32>
    %5 = arith.mulf %2, %4 : vector<1x512xf32>
    %6 = vector.extract_strided_slice %1 {offsets = [1, 0], sizes = [1, 512], strides = [1, 1]} : vector<4x512xf32> to vector<1x512xf32>
    %c0_4 = arith.constant 0 : index
    %c1 = arith.constant 1 : index
    %7 = memref.load %arg2[%c0_4, %c1] : memref<3x4xf32, #tpu.memory_space<smem>>
    %8 = vector.broadcast %7 : f32 to vector<1x512xf32>
    %9 = arith.mulf %6, %8 : vector<1x512xf32>
    %10 = arith.addf %5, %9 : vector<1x512xf32>
    %11 = vector.extract_strided_slice %1 {offsets = [2, 0], sizes = [1, 512], strides = [1, 1]} : vector<4x512xf32> to vector<1x512xf32>
    %c0_5 = arith.constant 0 : index
    %c2 = arith.constant 2 : index
    %12 = memref.load %arg2[%c0_5, %c2] : memref<3x4xf32, #tpu.memory_space<smem>>
    %13 = vector.broadcast %12 : f32 to vector<1x512xf32>
    %14 = arith.mulf %11, %13 : vector<1x512xf32>
    %15 = arith.addf %10, %14 : vector<1x512xf32>
    %16 = vector.extract_strided_slice %1 {offsets = [3, 0], sizes = [1, 512], strides = [1, 1]} : vector<4x512xf32> to vector<1x512xf32>
    %c0_6 = arith.constant 0 : index
    %c3 = arith.constant 3 : index
    %17 = memref.load %arg2[%c0_6, %c3] : memref<3x4xf32, #tpu.memory_space<smem>>
    %18 = vector.broadcast %17 : f32 to vector<1x512xf32>
    %19 = arith.mulf %16, %18 : vector<1x512xf32>
    %20 = arith.addf %15, %19 : vector<1x512xf32>
    %c0_7 = arith.constant 0 : index
    %21 = memref.load %arg3[%c0_7] : memref<3xf32, #tpu.memory_space<smem>>
    %22 = vector.broadcast %21 : f32 to vector<1x512xf32>
    %23 = arith.addf %20, %22 : vector<1x512xf32>
    %24 = vector.extract_strided_slice %1 {offsets = [0, 0], sizes = [1, 512], strides = [1, 1]} : vector<4x512xf32> to vector<1x512xf32>
    %c1_8 = arith.constant 1 : index
    %c0_9 = arith.constant 0 : index
    %25 = memref.load %arg2[%c1_8, %c0_9] : memref<3x4xf32, #tpu.memory_space<smem>>
    %26 = vector.broadcast %25 : f32 to vector<1x512xf32>
    %27 = arith.mulf %24, %26 : vector<1x512xf32>
    %28 = vector.extract_strided_slice %1 {offsets = [1, 0], sizes = [1, 512], strides = [1, 1]} : vector<4x512xf32> to vector<1x512xf32>
    %c1_10 = arith.constant 1 : index
    %c1_11 = arith.constant 1 : index
    %29 = memref.load %arg2[%c1_10, %c1_11] : memref<3x4xf32, #tpu.memory_space<smem>>
    %30 = vector.broadcast %29 : f32 to vector<1x512xf32>
    %31 = arith.mulf %28, %30 : vector<1x512xf32>
    %32 = arith.addf %27, %31 : vector<1x512xf32>
    %33 = vector.extract_strided_slice %1 {offsets = [2, 0], sizes = [1, 512], strides = [1, 1]} : vector<4x512xf32> to vector<1x512xf32>
    %c1_12 = arith.constant 1 : index
    %c2_13 = arith.constant 2 : index
    %34 = memref.load %arg2[%c1_12, %c2_13] : memref<3x4xf32, #tpu.memory_space<smem>>
    %35 = vector.broadcast %34 : f32 to vector<1x512xf32>
    %36 = arith.mulf %33, %35 : vector<1x512xf32>
    %37 = arith.addf %32, %36 : vector<1x512xf32>
    %38 = vector.extract_strided_slice %1 {offsets = [3, 0], sizes = [1, 512], strides = [1, 1]} : vector<4x512xf32> to vector<1x512xf32>
    %c1_14 = arith.constant 1 : index
    %c3_15 = arith.constant 3 : index
    %39 = memref.load %arg2[%c1_14, %c3_15] : memref<3x4xf32, #tpu.memory_space<smem>>
    %40 = vector.broadcast %39 : f32 to vector<1x512xf32>
    %41 = arith.mulf %38, %40 : vector<1x512xf32>
    %42 = arith.addf %37, %41 : vector<1x512xf32>
    %c1_16 = arith.constant 1 : index
    %43 = memref.load %arg3[%c1_16] : memref<3xf32, #tpu.memory_space<smem>>
    %44 = vector.broadcast %43 : f32 to vector<1x512xf32>
    %45 = arith.addf %42, %44 : vector<1x512xf32>
    %46 = vector.extract_strided_slice %1 {offsets = [0, 0], sizes = [1, 512], strides = [1, 1]} : vector<4x512xf32> to vector<1x512xf32>
    %c2_17 = arith.constant 2 : index
    %c0_18 = arith.constant 0 : index
    %47 = memref.load %arg2[%c2_17, %c0_18] : memref<3x4xf32, #tpu.memory_space<smem>>
    %48 = vector.broadcast %47 : f32 to vector<1x512xf32>
    %49 = arith.mulf %46, %48 : vector<1x512xf32>
    %50 = vector.extract_strided_slice %1 {offsets = [1, 0], sizes = [1, 512], strides = [1, 1]} : vector<4x512xf32> to vector<1x512xf32>
    %c2_19 = arith.constant 2 : index
    %c1_20 = arith.constant 1 : index
    %51 = memref.load %arg2[%c2_19, %c1_20] : memref<3x4xf32, #tpu.memory_space<smem>>
    %52 = vector.broadcast %51 : f32 to vector<1x512xf32>
    %53 = arith.mulf %50, %52 : vector<1x512xf32>
    %54 = arith.addf %49, %53 : vector<1x512xf32>
    %55 = vector.extract_strided_slice %1 {offsets = [2, 0], sizes = [1, 512], strides = [1, 1]} : vector<4x512xf32> to vector<1x512xf32>
    %c2_21 = arith.constant 2 : index
    %c2_22 = arith.constant 2 : index
    %56 = memref.load %arg2[%c2_21, %c2_22] : memref<3x4xf32, #tpu.memory_space<smem>>
    %57 = vector.broadcast %56 : f32 to vector<1x512xf32>
    %58 = arith.mulf %55, %57 : vector<1x512xf32>
    %59 = arith.addf %54, %58 : vector<1x512xf32>
    %60 = vector.extract_strided_slice %1 {offsets = [3, 0], sizes = [1, 512], strides = [1, 1]} : vector<4x512xf32> to vector<1x512xf32>
    %c2_23 = arith.constant 2 : index
    %c3_24 = arith.constant 3 : index
    %61 = memref.load %arg2[%c2_23, %c3_24] : memref<3x4xf32, #tpu.memory_space<smem>>
    %62 = vector.broadcast %61 : f32 to vector<1x512xf32>
    %63 = arith.mulf %60, %62 : vector<1x512xf32>
    %64 = arith.addf %59, %63 : vector<1x512xf32>
    %c2_25 = arith.constant 2 : index
    %65 = memref.load %arg3[%c2_25] : memref<3xf32, #tpu.memory_space<smem>>
    %66 = vector.broadcast %65 : f32 to vector<1x512xf32>
    %67 = arith.addf %64, %66 : vector<1x512xf32>
    %68 = tpu.concatenate %23, %45, %67 in 0 : vector<1x512xf32>, vector<1x512xf32>, vector<1x512xf32> -> vector<3x512xf32>
    %c0_26 = arith.constant 0 : index
    %c0_27 = arith.constant 0 : index
    %c0_28 = arith.constant 0 : index
    %69 = vector.load %arg5[%c0_26, %c0_27, %c0_28] : memref<1x3x512xf32, #tpu.memory_space<vmem>>, vector<1x3x512xf32>
    %70 = vector.shape_cast %69 : vector<1x3x512xf32> to vector<3x512xf32>
    %71 = vector.shape_cast %68 : vector<3x512xf32> to vector<1x3x512xf32>
    tpu.vector_store %arg5[%c0_26, %c0_27, %c0_28], %71 {strides = array<i32>} : memref<1x3x512xf32, #tpu.memory_space<vmem>>, vector<1x3x512xf32>,
    return
  }
  func.func @transform_0(%arg0: i32, %arg1: i32) -> (i32, i32) {
    %c0_i32 = arith.constant 0 : i32
    %c0_i32_0 = arith.constant 0 : i32
    %c0_i32_1 = arith.constant 0 : i32
    return %c0_i32, %c0_i32_0 : i32, i32
  }
  func.func @transform_1(%arg0: i32, %arg1: i32) -> i32 {
    %c0_i32 = arith.constant 0 : i32
    %c0_i32_0 = arith.constant 0 : i32
    return %c0_i32 : i32
  }
  func.func @transform_2(%arg0: i32, %arg1: i32) -> (i32, i32, i32) {
    %c0_i32 = arith.constant 0 : i32
    %c0_i32_0 = arith.constant 0 : i32
    return %arg0, %c0_i32, %arg1 : i32, i32, i32
  }
  func.func @transform_3(%arg0: i32, %arg1: i32) -> (i32, i32, i32) {
    %c0_i32 = arith.constant 0 : i32
    %c0_i32_0 = arith.constant 0 : i32
    return %arg0, %c0_i32, %arg1 : i32, i32, i32
  }
}

</mosaic_0001>

<llo_original>
// kernel: tpu_custom_call.1
$region0: #{tpu_custom_call.1}
  #allocation0 [shape = 'u32[]', space=smem, size = 0x4, offset = 0x4, fixed_abs, tag = 'smem constant byte address 0x4 - core index']
  #allocation1 [shape = 'u32[72,128]{1,0:T(1,128)}', space=vmem, size = 0x9000, scoped, tag = 'internal scratch']
  %s0 = inlined_call_operand.hbm [shape: f32[3,4], index: 0, kind: input, shape index: {}]
  %s1 = inlined_call_operand.hbm [shape: f32[3], index: 1, kind: input, shape index: {}]
  %s2 = inlined_call_operand.hbm [shape: f32[2,4,512], index: 2, kind: input, shape index: {}]
  %s3 = inlined_call_operand.vmem [shape: f32[2,3,512], index: 3, kind: output, shape index: {}]
  %s4 = sld [smem:[#allocation0]]
  $region57: #{tpu_custom_call.1} parent=0
    _
  %s6 = ssub.s32 1, %s4
  %s7 = scalar_select 0, %s6, %s4
  $region1: #{tpu_custom_call.1} parent=0
    #allocation2 [shape = 'u8[2048]{0}', space=smem, size = 0x800, scoped, tag = 'input window, operand 0, single buffered']
    #allocation3 [shape = 's32[2]{0}', space=sflag, size = 0x8, scoped, tag = 'scoped memory for tpu_custom_call.1']
    #allocation4 [shape = 's32[2]{0}', space=sflag, size = 0x8, scoped, tag = 'scoped memory for tpu_custom_call.1']
    #allocation5 [shape = 'u8[512]{0}', space=smem, size = 0x200, scoped, tag = 'input window, operand 1, single buffered']
    #allocation6 [shape = 's32[1]{0}', space=sflag, size = 0x4, scoped, tag = 'scoped memory for tpu_custom_call.1']
    #allocation7 [shape = 'u8[16384]{0}', space=vmem, size = 0x4000, scoped, tag = 'input window, operand 2']
    %8 = vsyncpa [#allocation4], 0
    %9 = vsyncpa [#allocation6], 0
    %10 = vsyncpa [#allocation3], 0
    %s11 = scalar_lea.sflag [#allocation3], 1
    %12 = vsyncpa %s11, 0
    loop: start=0, step=1, limit=4
    $region2: #{tpu_custom_call.1} parent=1 // loop_pre_header
      _
    $region3: #{tpu_custom_call.1} parent=1 // loop_header
      %s14 = sphi 0, %s18
      %p15 = scmp.ge.s32.totalorder %s14, 4
      %s21 = sphi 0, %s33
      %s22 = sphi 0, %s29
      %s23 = sphi 0, %s21
      %s24 = sphi 0, %s22
      %s25 = sphi 0, %s23
      %s26 = sphi 0, %s24
      %s34 = sphi 0, %s34
      %s36 = sphi 0, %s34
      %s37 = sphi 0, %s36
      %s51 = sphi 0, %s37
      %s55 = sphi 0, %s55
      %s57 = sphi 0, %s55
      %s58 = sphi 0, %s57
      %s72 = sphi 0, %s58
      %s80 = sphi 0, %s82
      %s83 = sphi 0, %s80
      %s84 = sphi 0, %s83
      %s100 = sphi 0, %s84
      %s108 = sphi 0, %s110
      %s111 = sphi 0, %s108
      %s112 = sphi 0, %s111
      %s128 = sphi 0, %s112
    $region4: #{tpu_custom_call.1} parent=1 // loop_header_branch
      %17 = sbr.rel (%p15) target = $region8
    $region5: #{tpu_custom_call.1} parent=1 // loop_body
      %s19 = ssub.s32 %s14, 1
      %s20 = ssub.s32 %s14, 2
      %s27 = sadd.s32 1, %s22
      %p28 = scmp.ge.s32.totalorder %s27, 1
      %s29 = scalar_select %p28, 0, %s27
      %s30 = sadd.s32 1, %s21
      %s31 = scalar_select %p28, %s30, %s21
      %p32 = scmp.ge.s32.totalorder %s31, 2
      %s33 = scalar_select %p32, 0, %s31
      %s35 = sadd.s32 %s34, 1
      %p38 = scmp.eq.s32.totalorder %s14, 1
      %p39 = scmp.ne.s32.totalorder %s34, %s36
      %p40 = scmp.eq.s32.totalorder %s14, 0
      %p41 = por %p39, %p40
      %p42 = scmp.ne.s32.totalorder %s34, %s36
      %p43 = scmp.eq.s32.totalorder %s19, 1
      %p44 = por %p42, %p43
      %p45 = scmp.ne.s32.totalorder %s36, %s37
      %p46 = scmp.eq.s32.totalorder %s19, 0
      %p47 = por %p45, %p46
      %p48 = scmp.ne.s32.totalorder %s36, %s37
      %p49 = scmp.eq.s32.totalorder %s20, 1
      %p50 = por %p48, %p49
      %p52 = scmp.ne.s32.totalorder %s37, %s51
      %p53 = scmp.eq.s32.totalorder %s20, 0
      %p54 = por %p52, %p53
      %s56 = sadd.s32 %s55, 1
      %p59 = scmp.eq.s32.totalorder %s14, 1
      %p60 = scmp.ne.s32.totalorder %s55, %s57
      %p61 = scmp.eq.s32.totalorder %s14, 0
      %p62 = por %p60, %p61
      %p63 = scmp.ne.s32.totalorder %s55, %s57
      %p64 = scmp.eq.s32.totalorder %s19, 1
      %p65 = por %p63, %p64
      %p66 = scmp.ne.s32.totalorder %s57, %s58
      %p67 = scmp.eq.s32.totalorder %s19, 0
      %p68 = por %p66, %p67
      %p69 = scmp.ne.s32.totalorder %s57, %s58
      %p70 = scmp.eq.s32.totalorder %s20, 1
      %p71 = por %p69, %p70
      %p73 = scmp.ne.s32.totalorder %s58, %s72
      %p74 = scmp.eq.s32.totalorder %s20, 0
      %p75 = por %p73, %p74
      %s76 = ssub.s32 %s21, %s33
      %s77 = ssub.s32 %s22, %s29
      %s78 = sor.u32 %s76, %s77
      %p79 = scmp.eq.s32.totalorder %s78, 0
      %s81 = sadd.s32 %s80, 1
      %s82 = scalar_select %p79, %s80, %s81
      %p85 = pneg %p79
      %p86 = scmp.eq.s32.totalorder %s14, 1
      %p87 = por %p85, %p86
      %p88 = scmp.ne.s32.totalorder %s80, %s83
      %p89 = scmp.eq.s32.totalorder %s14, 0
      %p90 = por %p88, %p89
      %p91 = scmp.ne.s32.totalorder %s80, %s83
      %p92 = scmp.eq.s32.totalorder %s19, 1
      %p93 = por %p91, %p92
      %p94 = scmp.ne.s32.totalorder %s83, %s84
      %p95 = scmp.eq.s32.totalorder %s19, 0
      %p96 = por %p94, %p95
      %p97 = scmp.ne.s32.totalorder %s83, %s84
      %p98 = scmp.eq.s32.totalorder %s20, 1
      %p99 = por %p97, %p98
      %p101 = scmp.ne.s32.totalorder %s84, %s100
      %p102 = scmp.eq.s32.totalorder %s20, 0
      %p103 = por %p101, %p102
      %s104 = ssub.s32 %s21, %s33
      %s105 = ssub.s32 %s22, %s29
      %s106 = sor.u32 %s104, %s105
      %p107 = scmp.eq.s32.totalorder %s106, 0
      %s109 = sadd.s32 %s108, 1
      %s110 = scalar_select %p107, %s108, %s109
      %p113 = pneg %p107
      %p114 = scmp.eq.s32.totalorder %s14, 1
      %p115 = por %p113, %p114
      %p116 = scmp.ne.s32.totalorder %s108, %s111
      %p117 = scmp.eq.s32.totalorder %s14, 0
      %p118 = por %p116, %p117
      %p119 = scmp.ne.s32.totalorder %s108, %s111
      %p120 = scmp.eq.s32.totalorder %s19, 1
      %p121 = por %p119, %p120
      %p122 = scmp.ne.s32.totalorder %s111, %s112
      %p123 = scmp.eq.s32.totalorder %s19, 0
      %p124 = por %p122, %p123
      %p125 = scmp.ne.s32.totalorder %s111, %s112
      %p126 = scmp.eq.s32.totalorder %s20, 1
      %p127 = por %p125, %p126
      %p129 = scmp.ne.s32.totalorder %s112, %s128
      %p130 = scmp.eq.s32.totalorder %s20, 0
      %p131 = por %p129, %p130
      %p132 = scmp.le.s32.totalorder 1, %s14
      %p133 = scmp.lt.s32.totalorder %s14, 3
      %p134 = pnand %p132, %p133
      %p135 = pneg %p134
      // Predicated region
      $region9: #{tpu_custom_call.1} parent=5 // pred_check
        _
      $region10: #{tpu_custom_call.1} parent=5 // pred_check_branch
        %137 = sbr.rel (%p134) target = $region12
      $region11: #{tpu_custom_call.1} parent=5 // pred_region
        %s138 = ssub.s32 %s14, 1
        // Predicated region
        $region13: #{tpu_custom_call.1} parent=11 // pred_check
          %p139 = pneg %p47
        $region14: #{tpu_custom_call.1} parent=11 // pred_check_branch
          %141 = sbr.rel (%p139) target = $region16
        $region15: #{tpu_custom_call.1} parent=11 // pred_region
          %143 = vsyncadd [#allocation4], 0
          %s145 = sshll.u32 %s0, 4
          %s146 = int_to_ptr.hbm [resolvable:$true] %s145
          %148 = dma.hbm_to_smem %s146, 64, [#allocation2], [#allocation4]
        $region16: #{tpu_custom_call.1} parent=11 // pred_fallthru
          _
        // Predicated region
        $region17: #{tpu_custom_call.1} parent=11 // pred_check
          %p149 = pneg %p68
        $region18: #{tpu_custom_call.1} parent=11 // pred_check_branch
          %151 = sbr.rel (%p149) target = $region20
        $region19: #{tpu_custom_call.1} parent=11 // pred_region
          %153 = vsyncadd [#allocation6], 0
          %s155 = sshll.u32 %s1, 4
          %s156 = int_to_ptr.hbm [resolvable:$true] %s155
          %158 = dma.hbm_to_smem %s156, 16, [#allocation5], [#allocation6]
        $region20: #{tpu_custom_call.1} parent=11 // pred_fallthru
          _
      $region12: #{tpu_custom_call.1} parent=5 // pred_fallthru
        _
      %p159 = scmp.lt.s32.totalorder %s14, 2
      // Predicated region
      $region21: #{tpu_custom_call.1} parent=5 // pred_check
        %p160 = pneg %p159
      $region22: #{tpu_custom_call.1} parent=5 // pred_check_branch
        %162 = sbr.rel (%p160) target = $region24
      $region23: #{tpu_custom_call.1} parent=5 // pred_region
        // Predicated region
        $region25: #{tpu_custom_call.1} parent=23 // pred_check
          %p163 = pneg %p90
        $region26: #{tpu_custom_call.1} parent=23 // pred_check_branch
          %165 = sbr.rel (%p163) target = $region28
        $region27: #{tpu_custom_call.1} parent=23 // pred_region
          %s166 = sand.u32 %s80, 1
          %s167 = scalar_lea.sflag [#allocation3], %s166
          %s168 = sand.u32 %s80, 1
          %s169 = smul.addr %s168, 16
          %s170 = scalar_lea.vmem [#allocation7], %s169
          %s171 = smul.u32 4, %s22
          %173 = vsyncadd %s167, 0
          %s174 = smul.addr %s21, 4
          %s175 = sadd.s32 %s171, %s174
          %s176 = smul.addr %s175, 4
          %s177 = scalar_lea.hbm %s2, %s176
          %s179 = sshll.u32 %s177, 4
          %s180 = int_to_ptr.hbm [resolvable:$true] %s179
          %s181 = sshll.u32 %s170, 4
          %s182 = int_to_ptr.vmem [resolvable:$true] %s181
          %184 = dma.hbm_to_vmem [thread:$0]  %s180, 256, %s182, %s167
        $region28: #{tpu_custom_call.1} parent=23 // pred_fallthru
          _
      $region24: #{tpu_custom_call.1} parent=5 // pred_fallthru
        _
      %p185 = scmp.le.s32.totalorder 1, %s14
      %p186 = scmp.lt.s32.totalorder %s14, 3
      %p187 = pnand %p185, %p186
      %p188 = pneg %p187
      // Predicated region
      $region29: #{tpu_custom_call.1} parent=5 // pred_check
        _
      $region30: #{tpu_custom_call.1} parent=5 // pred_check_branch
        %190 = sbr.rel (%p187) target = $region32
      $region31: #{tpu_custom_call.1} parent=5 // pred_region
        %s191 = ssub.s32 %s14, 1
        // Predicated region
        $region33: #{tpu_custom_call.1} parent=31 // pred_check
          %p192 = pneg %p47
        $region34: #{tpu_custom_call.1} parent=31 // pred_check_branch
          %194 = sbr.rel (%p192) target = $region36
        $region35: #{tpu_custom_call.1} parent=31 // pred_region
          %196 = dma.done [#allocation4], 64
        $region36: #{tpu_custom_call.1} parent=31 // pred_fallthru
          _
        // Predicated region
        $region37: #{tpu_custom_call.1} parent=31 // pred_check
          %p197 = pneg %p68
        $region38: #{tpu_custom_call.1} parent=31 // pred_check_branch
          %199 = sbr.rel (%p197) target = $region40
        $region39: #{tpu_custom_call.1} parent=31 // pred_region
          %201 = dma.done [#allocation6], 16
        $region40: #{tpu_custom_call.1} parent=31 // pred_fallthru
          _
        %s202 = sand.u32 %s83, 1
        %s203 = scalar_lea.sflag [#allocation3], %s202
        %s204 = sand.u32 %s83, 1
        %s205 = smul.addr %s204, 16
        %s206 = scalar_lea.vmem [#allocation7], %s205
        // Predicated region
        $region41: #{tpu_custom_call.1} parent=31 // pred_check
          %p207 = pneg %p96
        $region42: #{tpu_custom_call.1} parent=31 // pred_check_branch
          %209 = sbr.rel (%p207) target = $region44
        $region43: #{tpu_custom_call.1} parent=31 // pred_region
          %211 = dma.done %s203, 256
        $region44: #{tpu_custom_call.1} parent=31 // pred_fallthru
          _
        %212 = sfence
        %p213 = pneg %p47
        %p214 = pneg %p44
        %p215 = pneg %p68
        %p216 = pneg %p65
        %s217 = sand.u32 %s83, 1
        %s218 = scalar_lea.sflag [#allocation3], %s217
        %s219 = sand.u32 %s83, 1
        %s220 = smul.addr %s219, 16
        %s221 = scalar_lea.vmem [#allocation7], %s220
        %p222 = pneg %p96
        %p223 = pneg %p93
        %p224 = pneg %p124
        %p225 = pneg %p121
        %s226 = smul.u32 4, %s24
        %p227 = scmp.lt.s32.totalorder %s23, 1
        %s228 = scalar_select %p227, %s23, 1
        %p229 = scmp.lt.s32.totalorder %s226, 3
        %s230 = scalar_select %p229, %s226, 3
        %s231 = smul.addr %s228, 4
        %s232 = sadd.s32 %s230, %s231
        %s233 = smul.addr %s232, 4
        %s234 = scalar_lea.vmem %s3, %s233
        %s235 = smul.u32 4, %s24
        %s236 = smul.u32 4, %s24
        %p237 = scmp.lt.s32.totalorder %s23, 1
        %s238 = scalar_select %p237, %s23, 1
        %p239 = scmp.lt.s32.totalorder %s236, 3
        %s240 = scalar_select %p239, %s236, 3
        %s241 = smul.addr %s238, 4
        %s242 = sadd.s32 %s240, %s241
        %s243 = smul.addr %s242, 4
        %s244 = scalar_lea.vmem %s3, %s243
        %s245 = smul.u32 4, %s24
        %v246 = vld [vmem:[%s206] sm:$0xff]
        %v247 = vld [vmem:[%s206 + $0x8] sm:$0xff]
        %s248 = sld [smem:[#allocation2]]
        %v249 = vstv %s248
        %v250 = vmul.f32 %v246, %v249
        %v251 = vmul.f32 %v247, %v249
        %s252 = sld [smem:[#allocation2 + $0x1]]
        %v253 = vstv %s252
        %v254 = vmul.f32 %v246, %v253
        %v255 = vmul.f32 %v247, %v253
        %v258 = vrot.slane %v254, 5
        %v259 = vrot.slane %v258, 4
        %v260 = vrot.slane %v255, 5
        %v261 = vrot.slane %v260, 4
        %v264 = vadd.f32 %v250, %v259
        %v265 = vadd.f32 %v251, %v261
        %s266 = sld [smem:[#allocation2 + $0x2]]
        %v267 = vstv %s266
        %v268 = vmul.f32 %v246, %v267
        %v269 = vmul.f32 %v247, %v267
        %v272 = vrot.slane %v268, 6
        %v273 = vrot.slane %v272, 4
        %v274 = vrot.slane %v269, 6
        %v275 = vrot.slane %v274, 4
        %v278 = vadd.f32 %v264, %v273
        %v279 = vadd.f32 %v265, %v275
        %s280 = sld [smem:[#allocation2 + $0x3]]
        %v281 = vstv %s280
        %v282 = vmul.f32 %v246, %v281
        %v283 = vmul.f32 %v247, %v281
        %v286 = vrot.slane %v282, 7
        %v287 = vrot.slane %v286, 4
        %v288 = vrot.slane %v283, 7
        %v289 = vrot.slane %v288, 4
        %v292 = vadd.f32 %v278, %v287
        %v293 = vadd.f32 %v279, %v289
        %s294 = sld [smem:[#allocation5]]
        %v295 = vstv %s294
        %v296 = vadd.f32 %v292, %v295
        %v297 = vadd.f32 %v293, %v295
        %s298 = sld [smem:[#allocation2 + $0x80]]
        %v299 = vstv %s298
        %v300 = vmul.f32 %v246, %v299
        %v301 = vmul.f32 %v247, %v299
        %s302 = sld [smem:[#allocation2 + $0x81]]
        %v303 = vstv %s302
        %v304 = vmul.f32 %v246, %v303
        %v305 = vmul.f32 %v247, %v303
        %v308 = vrot.slane %v304, 5
        %v309 = vrot.slane %v308, 4
        %v310 = vrot.slane %v305, 5
        %v311 = vrot.slane %v310, 4
        %v314 = vadd.f32 %v300, %v309
        %v315 = vadd.f32 %v301, %v311
        %s316 = sld [smem:[#allocation2 + $0x82]]
        %v317 = vstv %s316
        %v318 = vmul.f32 %v246, %v317
        %v319 = vmul.f32 %v247, %v317
        %v322 = vrot.slane %v318, 6
        %v323 = vrot.slane %v322, 4
        %v324 = vrot.slane %v319, 6
        %v325 = vrot.slane %v324, 4
        %v328 = vadd.f32 %v314, %v323
        %v329 = vadd.f32 %v315, %v325
        %s330 = sld [smem:[#allocation2 + $0x83]]
        %v331 = vstv %s330
        %v332 = vmul.f32 %v246, %v331
        %v333 = vmul.f32 %v247, %v331
        %v336 = vrot.slane %v332, 7
        %v337 = vrot.slane %v336, 4
        %v338 = vrot.slane %v333, 7
        %v339 = vrot.slane %v338, 4
        %v342 = vadd.f32 %v328, %v337
        %v343 = vadd.f32 %v329, %v339
        %s344 = sld [smem:[#allocation5 + $0x1]]
        %v345 = vstv %s344
        %v346 = vadd.f32 %v342, %v345
        %v347 = vadd.f32 %v343, %v345
        %s348 = sld [smem:[#allocation2 + $0x100]]
        %v349 = vstv %s348
        %v350 = vmul.f32 %v246, %v349
        %v351 = vmul.f32 %v247, %v349
        %s352 = sld [smem:[#allocation2 + $0x101]]
        %v353 = vstv %s352
        %v354 = vmul.f32 %v246, %v353
        %v355 = vmul.f32 %v247, %v353
        %v358 = vrot.slane %v354, 5
        %v359 = vrot.slane %v358, 4
        %v360 = vrot.slane %v355, 5
        %v361 = vrot.slane %v360, 4
        %v364 = vadd.f32 %v350, %v359
        %v365 = vadd.f32 %v351, %v361
        %s366 = sld [smem:[#allocation2 + $0x102]]
        %v367 = vstv %s366
        %v368 = vmul.f32 %v246, %v367
        %v369 = vmul.f32 %v247, %v367
        %v372 = vrot.slane %v368, 6
        %v373 = vrot.slane %v372, 4
        %v374 = vrot.slane %v369, 6
        %v375 = vrot.slane %v374, 4
        %v378 = vadd.f32 %v364, %v373
        %v379 = vadd.f32 %v365, %v375
        %s380 = sld [smem:[#allocation2 + $0x103]]
        %v381 = vstv %s380
        %v382 = vmul.f32 %v246, %v381
        %v383 = vmul.f32 %v247, %v381
        %v386 = vrot.slane %v382, 7
        %v387 = vrot.slane %v386, 4
        %v388 = vrot.slane %v383, 7
        %v389 = vrot.slane %v388, 4
        %v392 = vadd.f32 %v378, %v387
        %v393 = vadd.f32 %v379, %v389
        %s394 = sld [smem:[#allocation5 + $0x2]]
        %v395 = vstv %s394
        %v396 = vadd.f32 %v392, %v395
        %v397 = vadd.f32 %v393, %v395
        %v400 = vperm.slane %v296, 0
        %v401 = vperm.slane %v296, 4
        %v402 = vperm.slane %v297, 0
        %v403 = vperm.slane %v297, 4
        %v410 = vperm.slane %v346, 0
        %v411 = vperm.slane %v346, 4
        %v412 = vperm.slane %v347, 0
        %v413 = vperm.slane %v347, 4
        %v420 = vperm.slane %v396, 0
        %v421 = vperm.slane %v396, 4
        %v422 = vperm.slane %v397, 0
        %v423 = vperm.slane %v397, 4
        %vm428 = vcmask 1040384
        %v429 = vsel %vm428, %v400, %v410
        %v430 = vsel %vm428, %v401, %v411
        %v431 = vsel %vm428, %v402, %v412
        %v432 = vsel %vm428, %v403, %v413
        %vm433 = vcmask 1041408
        %v434 = vsel %vm433, %v429, %v420
        %v435 = vsel %vm433, %v430, %v421
        %v436 = vsel %vm433, %v431, %v422
        %v437 = vsel %vm433, %v432, %v423
        %v442 = vrot.slane %v435, 4
        %v443 = vrot.slane %v437, 4
        %vm444 = vcmask 1043456
        %v445 = vsel %vm444, %v434, %v442
        %v446 = vsel %vm444, %v436, %v443
        %449 = vst [vmem:[%s244] sm:$0x77] %v445
        %450 = vst [vmem:[%s244 + $0x8] sm:$0x77] %v446
        %s451 = smul.u32 4, %s24
        %p452 = scmp.lt.s32.totalorder %s23, 1
        %s453 = scalar_select %p452, %s23, 1
        %p454 = scmp.lt.s32.totalorder %s451, 3
        %s455 = scalar_select %p454, %s451, 3
        %s456 = smul.addr %s453, 4
        %s457 = sadd.s32 %s455, %s456
        %s458 = smul.addr %s457, 4
        %s459 = scalar_lea.vmem %s3, %s458
        // Predicated region
        $region45: #{tpu_custom_call.1} parent=31 // pred_check
          %p460 = pneg %p121
        $region46: #{tpu_custom_call.1} parent=31 // pred_check_branch
          %462 = sbr.rel (%p460) target = $region48
        $region47: #{tpu_custom_call.1} parent=31 // pred_region
          %s463 = smul.u32 4, %s24
        $region48: #{tpu_custom_call.1} parent=31 // pred_fallthru
          _
      $region32: #{tpu_custom_call.1} parent=5 // pred_fallthru
        _
      %p464 = scmp.le.s32.totalorder 2, %s14
      // Predicated region
      $region49: #{tpu_custom_call.1} parent=5 // pred_check
        %p465 = pneg %p464
      $region50: #{tpu_custom_call.1} parent=5 // pred_check_branch
        %467 = sbr.rel (%p465) target = $region52
      $region51: #{tpu_custom_call.1} parent=5 // pred_region
        %s468 = ssub.s32 %s14, 2
        // Predicated region
        $region53: #{tpu_custom_call.1} parent=51 // pred_check
          %p469 = pneg %p127
        $region54: #{tpu_custom_call.1} parent=51 // pred_check_branch
          %471 = sbr.rel (%p469) target = $region56
        $region55: #{tpu_custom_call.1} parent=51 // pred_region
          %s472 = smul.u32 4, %s26
          %p473 = scmp.lt.s32.totalorder %s25, 1
          %s474 = scalar_select %p473, %s25, 1
          %p475 = scmp.lt.s32.totalorder %s472, 3
          %s476 = scalar_select %p475, %s472, 3
          %s477 = smul.addr %s474, 4
          %s478 = sadd.s32 %s476, %s477
          %s479 = smul.addr %s478, 4
          %s480 = scalar_lea.vmem %s3, %s479
        $region56: #{tpu_custom_call.1} parent=51 // pred_fallthru
          _
      $region52: #{tpu_custom_call.1} parent=5 // pred_fallthru
        _
    $region6: #{tpu_custom_call.1} parent=1 // loop_footer
      %s18 = sadd.s32 1, %s14
    $region7: #{tpu_custom_call.1} parent=1 // loop_footer_branch
      %13 = sbr.rel target = $region3
    $region8: #{tpu_custom_call.1} parent=1 // loop_exit
      _
    %481 = vsyncpa [#allocation3], 1
    %s482 = scalar_lea.sflag [#allocation3], 1
    %483 = vsyncpa %s482, 1
    %484 = vsyncpa [#allocation4], 1
    %s485 = scalar_lea.sflag [#allocation4], 1
    %486 = vsyncpa %s485, 1
    %487 = vsyncpa [#allocation6], 1

</llo_original>
